<compile_context>
chip_gen: v6e
topology: v6e:2x2x1
jax: 0.10.0
libtpu: 0.0.40
codegen_flags: <defaults>
</compile_context>

<pallas_src>
import functools
import math

import jax
import jax.numpy as jnp
from jax.experimental import pallas as pl
from jax.experimental.pallas import tpu as pltpu

_SQRT_2_OVER_PI = math.sqrt(2.0 / math.pi)


def _gelu_new(x):
    # transformer_lens gelu_new: 0.5*x*(1+tanh(sqrt(2/pi)*(x+0.044715*x^3)))
    return 0.5 * x * (1.0 + jnp.tanh(_SQRT_2_OVER_PI * (x + 0.044715 * x * x * x)))


def _round_up(a, b):
    return ((a + b - 1) // b) * b


# ---------------------------------------------------------------------------
# Kernels
# ---------------------------------------------------------------------------

def _mlp_kernel_resident(x_ref, w_in_ref, b_in_ref, w_out_ref, b_out_ref, o_ref):
    """Whole d_mlp resident in VMEM; grid = (row_tiles,)."""
    pre = jnp.dot(x_ref[...], w_in_ref[...], preferred_element_type=jnp.float32)
    pre = pre + b_in_ref[...]
    post = _gelu_new(pre)
    out = jnp.dot(post.astype(w_out_ref.dtype), w_out_ref[...],
                  preferred_element_type=jnp.float32)
    o_ref[...] = (out + b_out_ref[...]).astype(o_ref.dtype)


def _mlp_kernel_tiled_acc(x_ref, w_in_ref, b_in_ref, w_out_ref, b_out_ref, o_ref,
                          acc_ref):
    """d_mlp tiled as trailing 'arbitrary' axis; f32 scratch accumulator."""
    k = pl.program_id(1)

    @pl.when(k == 0)
    def _init():
        acc_ref[...] = jnp.zeros_like(acc_ref)

    pre = jnp.dot(x_ref[...], w_in_ref[...], preferred_element_type=jnp.float32)
    pre = pre + b_in_ref[...]
    post = _gelu_new(pre)
    acc_ref[...] += jnp.dot(post.astype(w_out_ref.dtype), w_out_ref[...],
                            preferred_element_type=jnp.float32)

    @pl.when(k == pl.num_programs(1) - 1)
    def _finalize():
        o_ref[...] = (acc_ref[...] + b_out_ref[...]).astype(o_ref.dtype)


def _mlp_kernel_tiled_f32out(x_ref, w_in_ref, b_in_ref, w_out_ref, b_out_ref,
                             o_ref):
    """d_mlp tiled; accumulate directly into the resident f32 output block."""
    k = pl.program_id(1)

    @pl.when(k == 0)
    def _init():
        o_ref[...] = jnp.zeros_like(o_ref)

    pre = jnp.dot(x_ref[...], w_in_ref[...], preferred_element_type=jnp.float32)
    pre = pre + b_in_ref[...]
    post = _gelu_new(pre)
    o_ref[...] += jnp.dot(post.astype(w_out_ref.dtype), w_out_ref[...],
                          preferred_element_type=jnp.float32)

    @pl.when(k == pl.num_programs(1) - 1)
    def _finalize():
        o_ref[...] += b_out_ref[...]


# ---------------------------------------------------------------------------
# Tile / VMEM planning
# ---------------------------------------------------------------------------

@functools.lru_cache(maxsize=1)
def _vmem_capacity_bytes():
    try:
        return int(pltpu.get_tpu_info().vmem_capacity_bytes)
    except Exception:
        return 64 * 1024 * 1024  # conservative default (v7x physical VMEM)


@functools.lru_cache(maxsize=1)
def _buffered_one_supported():
    # pl.Buffered(1) halves VMEM for blocks whose index map is constant over
    # the whole grid.  Probe once; if unsupported we budget double buffers.
    try:
        pl.BlockSpec((8, 128), lambda i: (0, 0), pipeline_mode=pl.Buffered(1))
        return True
    except Exception:
        return False


def _vmem_estimate(tm, tk, D, mm_bytes, out_bytes, *, weight_bufs, needs_acc):
    weights = weight_bufs * 2 * D * tk * mm_bytes      # W_in tile + W_out tile
    biases = weight_bufs * (tk + D) * 4                # f32 biases (tiny)
    x_tile = 2 * tm * D * mm_bytes                     # double-buffered rows in
    o_tile = 2 * tm * D * out_bytes                    # double-buffered rows out
    acc = tm * D * 4 if needs_acc else 0               # f32 accumulator scratch
    inter = tm * tk * (4 + 4 + mm_bytes)               # f32 pre + GELU tmp + cast
    return weights + biases + x_tile + o_tile + acc + inter


def _select_tiles(M_pad0, D, d_mlp, mm_bytes, out_bytes, row_unit, budget,
                  acc_in_out_ok):
    tm_cands = [t for t in (1024, 768, 512, 384, 256, 128, 64, 32, 16, 8)
                if t % row_unit == 0 and t <= M_pad0]
    if not tm_cands:
        tm_cands = [M_pad0]

    # 1) Resident weights: tk = d_mlp, one k step, weights fetched once.
    res_bufs = 1 if _buffered_one_supported() else 2
    for tm in tm_cands:
        if _vmem_estimate(tm, d_mlp, D, mm_bytes, out_bytes,
                          weight_bufs=res_bufs, needs_acc=False) <= budget:
            return tm, d_mlp

    # 2) Tiled reduction over d_mlp: weights stay double-buffered so the
    #    per-k-step weight DMA can be prefetched behind compute.
    for tk in (512, 256, 128):
        if tk >= d_mlp:
            continue
        for tm in tm_cands:
            if _vmem_estimate(tm, tk, D, mm_bytes, out_bytes,
                              weight_bufs=2,
                              needs_acc=not acc_in_out_ok) <= budget:
                return tm, tk

    # 3) Last resort (huge D): smallest tiles.
    return tm_cands[-1], (d_mlp if d_mlp <= 128 else 128)


# ---------------------------------------------------------------------------
# Public wrapper
# ---------------------------------------------------------------------------

def mlp_forward(x, W_in, b_in, W_out, b_out, *, out_dtype=None,
                matmul_dtype=jnp.bfloat16, tm=None, tk=None):
    """transformer_lens MLP forward (act_fn='gelu_new') on TPU.

    x: [batch, pos, d_model]; W_in: [d_model, d_mlp]; W_out: [d_mlp, d_model].
    MXU operands in `matmul_dtype` (bf16 default), f32 accumulation / bias /
    GELU.  For best performance store W_in / W_out (and x) in `matmul_dtype`
    so the per-call downcast pass over the weights disappears.
    """
    B, P, D = x.shape
    d_mlp = W_in.shape[1]
    if out_dtype is None:
        out_dtype = x.dtype
    M = B * P

    mm_bytes = jnp.dtype(matmul_dtype).itemsize
    out_bytes = jnp.dtype(out_dtype).itemsize
    row_unit = 16 if mm_bytes < 4 else 8     # bf16 packs 16 rows per vreg group

    M_pad0 = _round_up(M, row_unit)
    phys_vmem = _vmem_capacity_bytes()
    budget = int(phys_vmem * 0.70)
    acc_in_out_ok = jnp.dtype(out_dtype) == jnp.dtype(jnp.float32)

    tm_auto, tk_auto = _select_tiles(M_pad0, D, d_mlp, mm_bytes, out_bytes,
                                     row_unit, budget, acc_in_out_ok)
    tm = tm_auto if tm is None else int(tm)
    tk = tk_auto if tk is None else int(tk)
    tm = max(row_unit, (tm // row_unit) * row_unit)
    tm = min(tm, M_pad0)
    tk = min(tk, d_mlp)

    # Give the row axis >= 2 tiles when possible so a second TensorCore (v7x)
    # has work; harmless (one extra pipelined step) on single-TC chips.
    if M_pad0 // tm < 2 and M_pad0 >= 2 * row_unit:
        tm = max(row_unit, (M_pad0 // 2 // row_unit) * row_unit)

    M_pad = _round_up(M, tm)
    n_row_tiles = M_pad // tm

    resident = (tk == d_mlp)
    d_mlp_eff = d_mlp if resident else _round_up(d_mlp, tk)
    n_k_tiles = 1 if resident else d_mlp_eff // tk

    # ---- prepare operands --------------------------------------------------
    x2 = x.reshape(M, D)
    if M_pad != M:
        x2 = jnp.pad(x2, ((0, M_pad - M), (0, 0)))
    if x2.dtype != matmul_dtype:
        x2 = x2.astype(matmul_dtype)
    # TODO(synk): for production, store W_in/W_out in `matmul_dtype` so these
    # casts (a full HBM read+write of the weights) don't run on every call.
    W_in2 = W_in if W_in.dtype == matmul_dtype else W_in.astype(matmul_dtype)
    W_out2 = W_out if W_out.dtype == matmul_dtype else W_out.astype(matmul_dtype)
    b_in2 = b_in.reshape(1, d_mlp).astype(jnp.float32)
    b_out2 = b_out.reshape(1, D).astype(jnp.float32)
    if d_mlp_eff != d_mlp:
        # Zero-pad the hidden dim: gelu(0 + 0) == 0 contributes nothing.
        pad = d_mlp_eff - d_mlp
        W_in2 = jnp.pad(W_in2, ((0, 0), (0, pad)))
        b_in2 = jnp.pad(b_in2, ((0, 0), (0, pad)))
        W_out2 = jnp.pad(W_out2, ((0, pad), (0, 0)))

    single_ok = _buffered_one_supported()

    def spec(shape, index_map, constant_index):
        # Single-buffer ONLY blocks whose index map is constant over the whole
        # grid (fetched once); everything else keeps default double-buffering.
        if constant_index and single_ok:
            return pl.BlockSpec(shape, index_map, pipeline_mode=pl.Buffered(1))
        return pl.BlockSpec(shape, index_map)

    # ---- build grid / specs --------------------------------------------------
    if resident:
        grid = (n_row_tiles,)
        in_specs = [
            pl.BlockSpec((tm, D), lambda i: (i, 0)),             # x rows
            spec((D, d_mlp_eff), lambda i: (0, 0), True),        # W_in (whole)
            spec((1, d_mlp_eff), lambda i: (0, 0), True),        # b_in
            spec((d_mlp_eff, D), lambda i: (0, 0), True),        # W_out (whole)
            spec((1, D), lambda i: (0, 0), True),                # b_out
        ]
        out_specs = pl.BlockSpec((tm, D), lambda i: (i, 0))
        kernel = _mlp_kernel_resident
        scratch = []
        dims = ("parallel",)
        weight_bufs = 1 if single_ok else 2
        needs_acc = False
    else:
        grid = (n_row_tiles, n_k_tiles)
        in_specs = [
            pl.BlockSpec((tm, D), lambda i, k: (i, 0)),          # x rows
            pl.BlockSpec((D, tk), lambda i, k: (0, k)),          # W_in col tile
            pl.BlockSpec((1, tk), lambda i, k: (0, k)),          # b_in tile
            pl.BlockSpec((tk, D), lambda i, k: (k, 0)),          # W_out row tile
            spec((1, D), lambda i, k: (0, 0), True),             # b_out
        ]
        out_specs = pl.BlockSpec((tm, D), lambda i, k: (i, 0))
        dims = ("parallel", "arbitrary")
        weight_bufs = 2
        if acc_in_out_ok:
            kernel = _mlp_kernel_tiled_f32out   # accumulate straight into o_ref
            scratch = []
            needs_acc = False
        else:
            kernel = _mlp_kernel_tiled_acc
            scratch = [pltpu.VMEM((tm, D), jnp.float32)]
            needs_acc = True

    est = _vmem_estimate(tm, d_mlp_eff if resident else tk, D, mm_bytes,
                         out_bytes, weight_bufs=weight_bufs,
                         needs_acc=needs_acc)
    vmem_limit = int(min(max(est + (8 << 20), 32 << 20), int(phys_vmem * 0.9)))

    out = pl.pallas_call(
        kernel,
        out_shape=jax.ShapeDtypeStruct((M_pad, D), out_dtype),
        grid=grid,
        in_specs=in_specs,
        out_specs=out_specs,
        scratch_shapes=scratch,
        compiler_params=pltpu.CompilerParams(
            dimension_semantics=dims,
            vmem_limit_bytes=vmem_limit),
    )(x2, W_in2, b_in2, W_out2, b_out2)

    return out[:M].reshape(B, P, D)


# ---------------------------------------------------------------------------
# Reference (mirrors kernel numerics: bf16 MXU inputs, f32 accumulation)
# ---------------------------------------------------------------------------

def _reference_mlp(x, W_in, b_in, W_out, b_out, matmul_dtype=jnp.bfloat16):
    xb = x.astype(matmul_dtype)
    pre = jnp.einsum("bpd,dm->bpm", xb, W_in.astype(matmul_dtype),
                     preferred_element_type=jnp.float32) + b_in.astype(jnp.float32)
    post = _gelu_new(pre)
    out = jnp.einsum("bpm,md->bpd", post.astype(matmul_dtype),
                     W_out.astype(matmul_dtype),
                     preferred_element_type=jnp.float32) + b_out.astype(jnp.float32)
    return out


if __name__ == "__main__":
    key = jax.random.PRNGKey(0)

    def make_params(k, d_model, d_mlp, dtype=jnp.float32):
        kwi, kwo = jax.random.split(k)
        W_in = jax.random.normal(kwi, (d_model, d_mlp), dtype) / jnp.sqrt(d_model)
        b_in = jnp.zeros((d_mlp,), dtype)
        W_out = jax.random.normal(kwo, (d_mlp, d_model), dtype) / jnp.sqrt(d_mlp)
        b_out = jnp.zeros((d_model,), dtype)
        return W_in, b_in, W_out, b_out

    # 1) Small config consistent with the module (resident-weight path).
    batch, pos, d_model, d_mlp = 2, 8, 32, 128
    k1, k2 = jax.random.split(key)
    x = jax.random.normal(k1, (batch, pos, d_model), jnp.float32)
    W_in, b_in, W_out, b_out = make_params(k2, d_model, d_mlp)

    out = jax.block_until_ready(mlp_forward(x, W_in, b_in, W_out, b_out))
    assert out.shape == (batch, pos, d_model)
    ref = _reference_mlp(x, W_in, b_in, W_out, b_out)
    err = float(jnp.max(jnp.abs(out - ref)))
    assert jnp.allclose(out, ref, atol=5e-2, rtol=5e-2), err
    # Loose check vs exact-f32 module math (bf16 MXU inputs are intentional).
    pre_f32 = jnp.einsum("bpd,dm->bpm", x, W_in) + b_in
    out_f32 = jnp.einsum("bpm,md->bpd", _gelu_new(pre_f32), W_out) + b_out
    assert jnp.allclose(out, out_f32, atol=1.5e-1, rtol=1.5e-1)

    # 2) Forced tiled-reduction path (f32 output -> accumulate into o_ref).
    batch2, pos2, d_model2, d_mlp2 = 2, 64, 128, 512
    k3, k4 = jax.random.split(k2)
    xb = jax.random.normal(k3, (batch2, pos2, d_model2), jnp.float32)
    W_in2, b_in2, W_out2, b_out2 = make_params(k4, d_model2, d_mlp2)
    out2 = jax.block_until_ready(
        mlp_forward(xb, W_in2, b_in2, W_out2, b_out2, tm=64, tk=128))
    ref2 = _reference_mlp(xb, W_in2, b_in2, W_out2, b_out2)
    assert jnp.allclose(out2, ref2, atol=5e-2, rtol=5e-2)

    # 3) Forced tiled path with bf16 output (scratch-accumulator kernel).
    out3 = jax.block_until_ready(
        mlp_forward(xb, W_in2, b_in2, W_out2, b_out2, tm=64, tk=128,
                    out_dtype=jnp.bfloat16))
    assert jnp.allclose(out3.astype(jnp.float32), ref2, atol=1.5e-1, rtol=1e-1)

    print("KERNEL_OK")
</pallas_src>

<mosaic_0001>
module attributes {stable_mosaic.version = 11 : i64} {
  func.func @_mlp_kernel_resident(%arg0: i32, %arg1: memref<16x32xbf16, #tpu.memory_space<vmem>>, %arg2: memref<32x128xbf16, #tpu.memory_space<vmem>>, %arg3: memref<1x128xf32, #tpu.memory_space<vmem>>, %arg4: memref<128x32xbf16, #tpu.memory_space<vmem>>, %arg5: memref<1x32xf32, #tpu.memory_space<vmem>>, %arg6: memref<16x32xf32, #tpu.memory_space<vmem>>) attributes {dimension_semantics = [#tpu.dimension_semantics<parallel>], iteration_bounds = array<i64: 1>, scalar_prefetch = 0 : i64, scratch_operands = 0 : i64, tpu.core_type = #tpu.core_type<tc>, window_params = [{transform_indices = @transform_0, window_bounds = array<i64: 16, 32>}, {pipeline_mode = #tpu.pipeline_mode<synchronous>, transform_indices = @transform_1, window_bounds = array<i64: 32, 128>}, {pipeline_mode = #tpu.pipeline_mode<synchronous>, transform_indices = @transform_2, window_bounds = array<i64: 1, 128>}, {pipeline_mode = #tpu.pipeline_mode<synchronous>, transform_indices = @transform_3, window_bounds = array<i64: 128, 32>}, {pipeline_mode = #tpu.pipeline_mode<synchronous>, transform_indices = @transform_4, window_bounds = array<i64: 1, 32>}, {transform_indices = @transform_5, window_bounds = array<i64: 16, 32>}]} {
    %c0 = arith.constant 0 : index
    %c0_0 = arith.constant 0 : index
    %0 = vector.load %arg1[%c0, %c0_0] : memref<16x32xbf16, #tpu.memory_space<vmem>>, vector<16x32xbf16>
    %c0_1 = arith.constant 0 : index
    %c0_2 = arith.constant 0 : index
    %1 = vector.load %arg2[%c0_1, %c0_2] : memref<32x128xbf16, #tpu.memory_space<vmem>>, vector<32x128xbf16>
    %cst = arith.constant dense<0.000000e+00> : vector<16x128xf32>
    %2 = tpu.matmul %0, %1, %cst {dimension_numbers = #tpu.dot_dimension_numbers<[1], [0], [0], [1], [0, 0, 1, 1], [], []>} : vector<16x32xbf16>, vector<32x128xbf16>, vector<16x128xf32> -> vector<16x128xf32>
    %c0_3 = arith.constant 0 : index
    %c0_4 = arith.constant 0 : index
    %3 = vector.load %arg3[%c0_3, %c0_4] : memref<1x128xf32, #tpu.memory_space<vmem>>, vector<1x128xf32>
    %4 = vector.broadcast %3 : vector<1x128xf32> to vector<16x128xf32>
    %5 = arith.addf %2, %4 : vector<16x128xf32>
    %cst_5 = arith.constant 5.000000e-01 : f32
    %6 = vector.broadcast %cst_5 : f32 to vector<16x128xf32>
    %7 = arith.mulf %6, %5 : vector<16x128xf32>
    %cst_6 = arith.constant 4.471500e-02 : f32
    %8 = vector.broadcast %cst_6 : f32 to vector<16x128xf32>
    %9 = arith.mulf %8, %5 : vector<16x128xf32>
    %10 = arith.mulf %9, %5 : vector<16x128xf32>
    %11 = arith.mulf %10, %5 : vector<16x128xf32>
    %12 = arith.addf %5, %11 : vector<16x128xf32>
    %cst_7 = arith.constant 0.797884583 : f32
    %13 = vector.broadcast %cst_7 : f32 to vector<16x128xf32>
    %14 = arith.mulf %13, %12 : vector<16x128xf32>
    %15 = math.tanh %14 : vector<16x128xf32>
    %cst_8 = arith.constant 1.000000e+00 : f32
    %16 = vector.broadcast %cst_8 : f32 to vector<16x128xf32>
    %17 = arith.addf %16, %15 : vector<16x128xf32>
    %18 = arith.mulf %7, %17 : vector<16x128xf32>
    %19 = arith.truncf %18 : vector<16x128xf32> to vector<16x128xbf16>
    %c0_9 = arith.constant 0 : index
    %c0_10 = arith.constant 0 : index
    %20 = vector.load %arg4[%c0_9, %c0_10] : memref<128x32xbf16, #tpu.memory_space<vmem>>, vector<128x32xbf16>
    %cst_11 = arith.constant dense<0.000000e+00> : vector<16x32xf32>
    %21 = tpu.matmul %19, %20, %cst_11 {dimension_numbers = #tpu.dot_dimension_numbers<[1], [0], [0], [1], [0, 0, 1, 1], [], []>} : vector<16x128xbf16>, vector<128x32xbf16>, vector<16x32xf32> -> vector<16x32xf32>
    %c0_12 = arith.constant 0 : index
    %c0_13 = arith.constant 0 : index
    %22 = vector.load %arg5[%c0_12, %c0_13] : memref<1x32xf32, #tpu.memory_space<vmem>>, vector<1x32xf32>
    %23 = vector.broadcast %22 : vector<1x32xf32> to vector<16x32xf32>
    %24 = arith.addf %21, %23 : vector<16x32xf32>
    %c0_14 = arith.constant 0 : index
    %c0_15 = arith.constant 0 : index
    %25 = vector.load %arg6[%c0_14, %c0_15] : memref<16x32xf32, #tpu.memory_space<vmem>>, vector<16x32xf32>
    tpu.vector_store %arg6[%c0_14, %c0_15], %24 {strides = array<i32>} : memref<16x32xf32, #tpu.memory_space<vmem>>, vector<16x32xf32>,
    return
  }
  func.func @transform_0(%arg0: i32) -> (i32, i32) {
    %c0_i32 = arith.constant 0 : i32
    %c0_i32_0 = arith.constant 0 : i32
    return %arg0, %c0_i32 : i32, i32
  }
  func.func @transform_1(%arg0: i32) -> (i32, i32) {
    %c0_i32 = arith.constant 0 : i32
    %c0_i32_0 = arith.constant 0 : i32
    %c0_i32_1 = arith.constant 0 : i32
    return %c0_i32, %c0_i32_0 : i32, i32
  }
  func.func @transform_2(%arg0: i32) -> (i32, i32) {
    %c0_i32 = arith.constant 0 : i32
    %c0_i32_0 = arith.constant 0 : i32
    %c0_i32_1 = arith.constant 0 : i32
    return %c0_i32, %c0_i32_0 : i32, i32
  }
  func.func @transform_3(%arg0: i32) -> (i32, i32) {
    %c0_i32 = arith.constant 0 : i32
    %c0_i32_0 = arith.constant 0 : i32
    %c0_i32_1 = arith.constant 0 : i32
    return %c0_i32, %c0_i32_0 : i32, i32
  }
  func.func @transform_4(%arg0: i32) -> (i32, i32) {
    %c0_i32 = arith.constant 0 : i32
    %c0_i32_0 = arith.constant 0 : i32
    %c0_i32_1 = arith.constant 0 : i32
    return %c0_i32, %c0_i32_0 : i32, i32
  }
  func.func @transform_5(%arg0: i32) -> (i32, i32) {
    %c0_i32 = arith.constant 0 : i32
    %c0_i32_0 = arith.constant 0 : i32
    return %arg0, %c0_i32 : i32, i32
  }
}

</mosaic_0001>

<llo_original>
// kernel: tpu_custom_call.1
$region0: #{tpu_custom_call.1}
  #allocation0 [shape = 'u32[]', space=smem, size = 0x4, offset = 0x4, fixed_abs, tag = 'smem constant byte address 0x4 - core index']
  #allocation1 [shape = 'u32[144,128]{1,0:T(1,128)}', space=vmem, size = 0x12000, scoped, tag = 'internal scratch']
  %s0 = inlined_call_operand.vmem [shape: bf16[16,32], index: 0, kind: input, shape index: {}]
  %s1 = inlined_call_operand.vmem [shape: bf16[32,128], index: 1, kind: input, shape index: {}]
  %s2 = inlined_call_operand.vmem [shape: f32[1,128], index: 2, kind: input, shape index: {}]
  %s3 = inlined_call_operand.vmem [shape: bf16[128,32], index: 3, kind: input, shape index: {}]
  %s4 = inlined_call_operand.vmem [shape: f32[1,32], index: 4, kind: input, shape index: {}]
  %s5 = inlined_call_operand.hbm [shape: f32[16,32], index: 5, kind: output, shape index: {}]
  %s6 = sld [smem:[#allocation0]]
  $region30: #{tpu_custom_call.1} parent=0
    _
  %s8 = ssub.s32 1, %s6
  %s9 = scalar_select 0, %s8, %s6
  $region1: #{tpu_custom_call.1} parent=0
    #allocation2 [shape = 'u8[8192]{0}', space=vmem, size = 0x2000, scoped, tag = 'output window, operand 0, single buffered']
    #allocation3 [shape = 's32[1]{0}', space=sflag, size = 0x4, scoped, tag = 'scoped memory for tpu_custom_call.1']
    %10 = vsyncpa [#allocation3], 0
    // Predicated region
    $region2: #{tpu_custom_call.1} parent=1 // pred_check
      _
    $region3: #{tpu_custom_call.1} parent=1 // pred_check_branch
      %12 = sbr.rel (0) target = $region5
    $region4: #{tpu_custom_call.1} parent=1 // pred_region
      _
    $region5: #{tpu_custom_call.1} parent=1 // pred_fallthru
      _
    // Predicated region
    $region6: #{tpu_custom_call.1} parent=1 // pred_check
      _
    $region7: #{tpu_custom_call.1} parent=1 // pred_check_branch
      %14 = sbr.rel (0) target = $region9
    $region8: #{tpu_custom_call.1} parent=1 // pred_region
      _
    $region9: #{tpu_custom_call.1} parent=1 // pred_fallthru
      _
    // Predicated region
    $region10: #{tpu_custom_call.1} parent=1 // pred_check
      _
    $region11: #{tpu_custom_call.1} parent=1 // pred_check_branch
      %16 = sbr.rel (0) target = $region13
    $region12: #{tpu_custom_call.1} parent=1 // pred_region
      _
    $region13: #{tpu_custom_call.1} parent=1 // pred_fallthru
      _
    // Predicated region
    $region14: #{tpu_custom_call.1} parent=1 // pred_check
      _
    $region15: #{tpu_custom_call.1} parent=1 // pred_check_branch
      %18 = sbr.rel (0) target = $region17
    $region16: #{tpu_custom_call.1} parent=1 // pred_region
      _
    $region17: #{tpu_custom_call.1} parent=1 // pred_fallthru
      _
    // Predicated region
    $region18: #{tpu_custom_call.1} parent=1 // pred_check
      _
    $region19: #{tpu_custom_call.1} parent=1 // pred_check_branch
      %20 = sbr.rel (0) target = $region21
    $region20: #{tpu_custom_call.1} parent=1 // pred_region
      _
    $region21: #{tpu_custom_call.1} parent=1 // pred_fallthru
      _
    %v22 = vld [vmem:[%s0] sm:$0xf]
    %v23 = vld [vmem:[%s0 + $0x4] sm:$0xf]
    %v24 = vld [vmem:[%s1] sm:$0xf]
    %v25 = vld [vmem:[%s1 + $0x4] sm:$0xf]
    %v26 = vld [vmem:[%s1 + $0x8] sm:$0xf]
    %v27 = vld [vmem:[%s1 + $0xc] sm:$0xf]
    %v28 = vld [vmem:[%s2] sm:$0x1]
    %v30 = vlaneseq
    %v31 = vshrl.u32 %v30, 7
    %v32 = vsub.s32 0, %v31
    %v33 = vrot.slane %v28, %v32
    %v37 = vunpack.c.l.b16 %v22
    %v38 = vunpack.c.l.b16 %v23
    %v39 = vpack.c.b16 %v38, %v37
    %v44 = vunpack.c.l.b16 %v24
    %v45 = vunpack.c.l.b16 %v25
    %v46 = vunpack.c.l.b16 %v26
    %v47 = vunpack.c.l.b16 %v27
    %v48 = vpack.c.b16 %v45, %v44
    %v49 = vpack.c.b16 %v47, %v46
    %vm52 = vcmask 261120
    %v54 = vsel %vm52, %v39, 0
    %56 = vmatprep.subr.bf16.mxu0 0
    %57 = vmatpush1.bf16.msra.mxu0 0
    %58 = vmatprep.subr.bf16.mxu0 0
    %59 = vmatpush1.bf16.msra.mxu0 0
    %60 = vmatprep.subr.bf16.mxu0 0
    %61 = vmatpush1.bf16.msra.mxu0 0
    %62 = vmatprep.subr.bf16.mxu0 0
    %63 = vmatpush1.bf16.msra.mxu0 0
    %64 = vmatprep.subr.bf16.mxu0 0
    %65 = vmatpush1.bf16.msra.mxu0 0
    %66 = vmatprep.subr.bf16.mxu0 0
    %67 = vmatpush1.bf16.msra.mxu0 0
    %68 = vmatprep.subr.bf16.mxu0 0
    %69 = vmatpush1.bf16.msra.mxu0 %v49
    %70 = vmatprep.subr.bf16.mxu0 0
    %71 = vmatpush1.bf16.msra.mxu0 %v48
    %72 = vmatprep.subr.bf16.mxu0 0
    %73 = vmatpush2.bf16.msra.mxu0 0
    %74 = vmatprep.subr.bf16.mxu0 0
    %75 = vmatpush2.bf16.msra.mxu0 0
    %76 = vmatprep.subr.bf16.mxu0 0
    %77 = vmatpush2.bf16.msra.mxu0 0
    %78 = vmatprep.subr.bf16.mxu0 0
    %79 = vmatpush2.bf16.msra.mxu0 0
    %80 = vmatprep.subr.bf16.mxu0 0
    %81 = vmatpush2.bf16.msra.mxu0 0
    %82 = vmatprep.subr.bf16.mxu0 0
    %83 = vmatpush2.bf16.msra.mxu0 0
    %84 = vmatprep.subr.bf16.mxu0 0
    %85 = vmatpush2.bf16.msra.mxu0 0
    %86 = vmatprep.subr.bf16.mxu0 0
    %87 = vmatpush2.bf16.msra.mxu0 0
    %88 = vmatprep.mubr.bf16.mxu0 0
    %89 = vmatmul.mubr.bf16.gmra.mxu0 %v54
    %v90 = vpop.f32.mrf.mxu0
    %v91 = vadd.f32 %v33, %v90
    %v92 = vpop.f32.mrf.mxu0
    %v93 = vpop.f32.mrf.mxu0
    %v94 = vadd.f32 %v33, %v93
    %v95 = vpop.f32.mrf.mxu0
    %96 = vdwg.mxu0
    %v97 = vmul.f32 %v91, 0.5
    %v98 = vmul.f32 %v94, 0.5
    %v99 = vmul.f32 %v91, 0.044715
    %v100 = vmul.f32 %v94, 0.044715
    %v101 = vmul.f32 %v99, %v91
    %v102 = vmul.f32 %v100, %v94
    %v103 = vmul.f32 %v101, %v91
    %v104 = vmul.f32 %v102, %v94
    %v105 = vadd.f32 %v91, %v103
    %v106 = vadd.f32 %v94, %v104
    %v107 = vmul.f32 %v105, 0.7978846
    %v108 = vmul.f32 %v106, 0.7978846
    %v109 = vtanh.pop %v107
    %v110 = vtanh.pop %v108
    %v111 = vadd.f32 %v109, 1.0
    %v112 = vadd.f32 %v110, 1.0
    %v113 = vmul.f32 %v97, %v111
    %v114 = vmul.f32 %v98, %v112
    %v115 = vpack.c.bf16 %v114, %v113
    %v116 = vld [vmem:[%s3] sm:$0xf]
    %v117 = vld [vmem:[%s3 + $0x4] sm:$0xf]
    %v118 = vld [vmem:[%s3 + $0x8] sm:$0xf]
    %v119 = vld [vmem:[%s3 + $0xc] sm:$0xf]
    %v120 = vld [vmem:[%s3 + $0x10] sm:$0xf]
    %v121 = vld [vmem:[%s3 + $0x14] sm:$0xf]
    %v122 = vld [vmem:[%s3 + $0x18] sm:$0xf]
    %v123 = vld [vmem:[%s3 + $0x1c] sm:$0xf]
    %v124 = vld [vmem:[%s3 + $0x20] sm:$0xf]
    %v125 = vld [vmem:[%s3 + $0x24] sm:$0xf]
    %v126 = vld [vmem:[%s3 + $0x28] sm:$0xf]
    %v127 = vld [vmem:[%s3 + $0x2c] sm:$0xf]
    %v128 = vld [vmem:[%s3 + $0x30] sm:$0xf]
    %v129 = vld [vmem:[%s3 + $0x34] sm:$0xf]
    %v130 = vld [vmem:[%s3 + $0x38] sm:$0xf]
    %v131 = vld [vmem:[%s3 + $0x3c] sm:$0xf]
    %v132 = vld [vmem:[%s4] sm:$0x1]
    %v134 = vlaneseq
    %v135 = vshrl.u32 %v134, 7
    %v136 = vsub.s32 0, %v135
    %v137 = vrot.slane %v132, %v136
    %v155 = vunpack.c.l.b16 %v116
    %v156 = vunpack.c.l.b16 %v117
    %v157 = vunpack.c.l.b16 %v118
    %v158 = vunpack.c.l.b16 %v119
    %v159 = vunpack.c.l.b16 %v120
    %v160 = vunpack.c.l.b16 %v121
    %v161 = vunpack.c.l.b16 %v122
    %v162 = vunpack.c.l.b16 %v123
    %v163 = vunpack.c.l.b16 %v124
    %v164 = vunpack.c.l.b16 %v125
    %v165 = vunpack.c.l.b16 %v126
    %v166 = vunpack.c.l.b16 %v127
    %v167 = vunpack.c.l.b16 %v128
    %v168 = vunpack.c.l.b16 %v129
    %v169 = vunpack.c.l.b16 %v130
    %v170 = vunpack.c.l.b16 %v131
    %v171 = vpack.c.b16 %v156, %v155
    %v172 = vpack.c.b16 %v158, %v157
    %v173 = vpack.c.b16 %v160, %v159
    %v174 = vpack.c.b16 %v162, %v161
    %v175 = vpack.c.b16 %v164, %v163
    %v176 = vpack.c.b16 %v166, %v165
    %v177 = vpack.c.b16 %v168, %v167
    %v178 = vpack.c.b16 %v170, %v169
    %187 = vmatprep.subr.bf16.mxu0 0
    %188 = vmatpush1.bf16.msra.mxu0 %v178
    %189 = vmatprep.subr.bf16.mxu0 0
    %190 = vmatpush1.bf16.msra.mxu0 %v177
    %191 = vmatprep.subr.bf16.mxu0 0
    %192 = vmatpush1.bf16.msra.mxu0 %v176
    %193 = vmatprep.subr.bf16.mxu0 0
    %194 = vmatpush1.bf16.msra.mxu0 %v175
    %195 = vmatprep.subr.bf16.mxu0 0
    %196 = vmatpush1.bf16.msra.mxu0 %v174
    %197 = vmatprep.subr.bf16.mxu0 0
    %198 = vmatpush1.bf16.msra.mxu0 %v173
    %199 = vmatprep.subr.bf16.mxu0 0
    %200 = vmatpush1.bf16.msra.mxu0 %v172
    %201 = vmatprep.subr.bf16.mxu0 0
    %202 = vmatpush1.bf16.msra.mxu0 %v171
    %203 = vmatprep.subr.bf16.mxu0 0
    %204 = vmatpush2.bf16.msra.mxu0 0
    %205 = vmatprep.subr.bf16.mxu0 0
    %206 = vmatpush2.bf16.msra.mxu0 0
    %207 = vmatprep.subr.bf16.mxu0 0
    %208 = vmatpush2.bf16.msra.mxu0 0
    %209 = vmatprep.subr.bf16.mxu0 0
    %210 = vmatpush2.bf16.msra.mxu0 0
    %211 = vmatprep.subr.bf16.mxu0 0
    %212 = vmatpush2.bf16.msra.mxu0 0
    %213 = vmatprep.subr.bf16.mxu0 0
    %214 = vmatpush2.bf16.msra.mxu0 0
    %215 = vmatprep.subr.bf16.mxu0 0
    %216 = vmatpush2.bf16.msra.mxu0 0
    %217 = vmatprep.subr.bf16.mxu0 0
    %218 = vmatpush2.bf16.msra.mxu0 0
    %219 = vmatprep.mubr.bf16.mxu0 0
    %220 = vmatmul.mubr.bf16.gmra.mxu0 %v115
    %v221 = vpop.f32.mrf.mxu0
    %v222 = vadd.f32 %v137, %v221
    %v223 = vpop.f32.mrf.mxu0
    %v224 = vpop.f32.mrf.mxu0
    %v225 = vadd.f32 %v137, %v224
    %v226 = vpop.f32.mrf.mxu0
    %227 = vdwg.mxu0
    %228 = vst.msk [vmem:[#allocation2] sm:$0xff] %vm52, %v222
    %229 = vst.msk [vmem:[#allocation2 + $0x8] sm:$0xff] %vm52, %v225
    // Predicated region
    $region22: #{tpu_custom_call.1} parent=1 // pred_check
      _
    $region23: #{tpu_custom_call.1} parent=1 // pred_check_branch
      %231 = sbr.rel (0) target = $region25
    $region24: #{tpu_custom_call.1} parent=1 // pred_region
      %s233 = ssub.s32 256, 256
      %234 = vsyncadd [#allocation3], %s233
      %s235 = sshll.u32 [#allocation2], 4
      %s236 = int_to_ptr.vmem [resolvable:$true] %s235
      %241 = dma.vmem_to_hbm [thread:$0]  %s236, 256, %s5, [#allocation3], 128, 128, 8
    $region25: #{tpu_custom_call.1} parent=1 // pred_fallthru
      _
    // Predicated region
    $region26: #{tpu_custom_call.1} parent=1 // pred_check
      _
    $region27: #{tpu_custom_call.1} parent=1 // pred_check_branch
      %243 = sbr.rel (0) target = $region29
    $region28: #{tpu_custom_call.1} parent=1 // pred_region
      %244 = dma.done [#allocation3], 256
    $region29: #{tpu_custom_call.1} parent=1 // pred_fallthru
      _
    %245 = vsyncpa [#allocation3], 1

</llo_original>
